<compile_context>
chip_gen: v5e
topology: v5e:2x2
jax: 0.10.0
libtpu: 0.0.40
codegen_flags: <defaults>
</compile_context>

<pallas_src>
import jax
import jax.numpy as jnp
from jax.experimental import pallas as pl
from jax.experimental.pallas import tpu as pltpu


# Packed parameter layout (18 f32 scalars, resident in SMEM):
#   [0:4)   w1[j]        Linear(1->4) weight (input dim squeezed)
#   [4:8)   b1[j]        Linear(1->4) bias
#   [8:16)  w2[j, c]     Linear(4->2) weight, row-major: index 8 + 2*j + c
#   [16:18) b2[c]        Linear(4->2) bias
def fc_kernel(params_ref, x_ref, o_ref):
    # Lane-dense: batch lives on the 128-lane axis.
    x = x_ref[...]                                        # (1, TB) f32

    # Linear(1->4) + sigmoid: scalar*vector FMAs (VPU) + logistic (EUP).
    h = [jax.nn.sigmoid(params_ref[j] * x + params_ref[4 + j]) for j in range(4)]

    # Linear(4->2) as unrolled VPU multiply-adds (no degenerate MXU matmul).
    z0 = (params_ref[8]  * h[0] + params_ref[10] * h[1]
          + params_ref[12] * h[2] + params_ref[14] * h[3] + params_ref[16])
    z1 = (params_ref[9]  * h[0] + params_ref[11] * h[1]
          + params_ref[13] * h[2] + params_ref[15] * h[3] + params_ref[17])

    # 2-class softmax: softmax([z0, z1]) == [sigmoid(z0 - z1), 1 - sigmoid(z0 - z1)]
    p0 = jax.nn.sigmoid(z0 - z1)                          # EUP, no XLU reductions
    o_ref[0:1, :] = p0
    o_ref[1:2, :] = 1.0 - p0


def _round_up(n, m):
    return ((n + m - 1) // m) * m


def fully_connected(x, w1, b1, w2, b2, *, max_batch_tile=512):
    """x: (B, 1). Weights stored as (in, out): w1 (1,4), b1 (4,), w2 (4,2), b2 (2,)."""
    B = x.shape[0]

    # Lane-dense layout: batch on the lane axis, padded to a 128-multiple tile.
    tb = min(max_batch_tile, _round_up(B, 128))
    b_pad = _round_up(B, tb)
    x_lanes = jnp.zeros((1, b_pad), jnp.float32).at[0, :B].set(
        x.reshape(B).astype(jnp.float32))

    # One packed parameter array -> one DMA, read as SMEM scalars in-kernel.
    params = jnp.concatenate([
        w1.reshape(-1), b1.reshape(-1), w2.reshape(-1), b2.reshape(-1),
    ]).astype(jnp.float32)                                # (18,)

    out_t = pl.pallas_call(
        fc_kernel,
        out_shape=jax.ShapeDtypeStruct((2, b_pad), jnp.float32),
        grid=(b_pad // tb,),
        in_specs=[
            pl.BlockSpec(memory_space=pltpu.MemorySpace.SMEM),  # packed params
            pl.BlockSpec((1, tb), lambda i: (0, i)),            # x batch tile
        ],
        out_specs=pl.BlockSpec((2, tb), lambda i: (0, i)),      # lane-dense out slab
        compiler_params=pltpu.CompilerParams(
            dimension_semantics=("parallel",),   # shards batch tiles across v7x's 2 TCs
            vmem_limit_bytes=32 * 1024 * 1024,   # safe on v7x (64 MiB physical)
        ),
    )(params, x_lanes)

    # (2, b_pad) lane-dense slab -> (B, 2); layout plumbing stays in XLA.
    return out_t[:, :B].T


def _ref(x, w1, b1, w2, b2):
    h = jax.nn.sigmoid(x @ w1 + b1)
    return jax.nn.softmax(h @ w2 + b2, axis=1)


if __name__ == "__main__":
    key = jax.random.PRNGKey(0)
    kx, k1, k2, k3, k4 = jax.random.split(key, 5)

    B = 8  # batch size
    x = jax.random.normal(kx, (B, 1), dtype=jnp.float32)

    # PyTorch-style uniform(-1/sqrt(fan_in), 1/sqrt(fan_in)) init, (in, out) layout.
    w1 = jax.random.uniform(k1, (1, 4), jnp.float32, -1.0, 1.0)   # fan_in = 1
    b1 = jax.random.uniform(k2, (4,), jnp.float32, -1.0, 1.0)
    w2 = jax.random.uniform(k3, (4, 2), jnp.float32, -0.5, 0.5)   # fan_in = 4
    b2 = jax.random.uniform(k4, (2,), jnp.float32, -0.5, 0.5)

    out = fully_connected(x, w1, b1, w2, b2)
    out = jax.block_until_ready(out)

    ref = _ref(x, w1, b1, w2, b2)
    assert out.shape == (B, 2)
    assert jnp.allclose(out, ref, atol=1e-5, rtol=1e-5)
    # Softmax rows should sum to 1.
    assert jnp.allclose(jnp.sum(out, axis=1), jnp.ones((B,)), atol=1e-5)

    print("KERNEL_OK")
</pallas_src>

<mosaic_0001>
module attributes {stable_mosaic.version = 11 : i64} {
  func.func @fc_kernel(%arg0: i32, %arg1: memref<18xf32, #tpu.memory_space<smem>>, %arg2: memref<1x128xf32, #tpu.memory_space<vmem>>, %arg3: memref<2x128xf32, #tpu.memory_space<vmem>>) attributes {dimension_semantics = [#tpu.dimension_semantics<parallel>], iteration_bounds = array<i64: 1>, scalar_prefetch = 0 : i64, scratch_operands = 0 : i64, tpu.core_type = #tpu.core_type<tc>, window_params = [{transform_indices = @transform_0, window_bounds = array<i64: 18>}, {transform_indices = @transform_1, window_bounds = array<i64: 1, 128>}, {transform_indices = @transform_2, window_bounds = array<i64: 2, 128>}]} {
    %c0 = arith.constant 0 : index
    %c0_0 = arith.constant 0 : index
    %0 = vector.load %arg2[%c0, %c0_0] : memref<1x128xf32, #tpu.memory_space<vmem>>, vector<1x128xf32>
    %c0_1 = arith.constant 0 : index
    %1 = memref.load %arg1[%c0_1] : memref<18xf32, #tpu.memory_space<smem>>
    %2 = vector.broadcast %1 : f32 to vector<1x128xf32>
    %3 = arith.mulf %2, %0 : vector<1x128xf32>
    %c4 = arith.constant 4 : index
    %4 = memref.load %arg1[%c4] : memref<18xf32, #tpu.memory_space<smem>>
    %5 = vector.broadcast %4 : f32 to vector<1x128xf32>
    %6 = arith.addf %3, %5 : vector<1x128xf32>
    %7 = arith.negf %6 : vector<1x128xf32>
    %8 = math.exp %7 : vector<1x128xf32>
    %cst = arith.constant 1.000000e+00 : f32
    %9 = vector.broadcast %cst : f32 to vector<1x128xf32>
    %10 = arith.addf %9, %8 : vector<1x128xf32>
    %11 = arith.divf %9, %10 : vector<1x128xf32>
    %c1 = arith.constant 1 : index
    %12 = memref.load %arg1[%c1] : memref<18xf32, #tpu.memory_space<smem>>
    %13 = vector.broadcast %12 : f32 to vector<1x128xf32>
    %14 = arith.mulf %13, %0 : vector<1x128xf32>
    %c5 = arith.constant 5 : index
    %15 = memref.load %arg1[%c5] : memref<18xf32, #tpu.memory_space<smem>>
    %16 = vector.broadcast %15 : f32 to vector<1x128xf32>
    %17 = arith.addf %14, %16 : vector<1x128xf32>
    %18 = arith.negf %17 : vector<1x128xf32>
    %19 = math.exp %18 : vector<1x128xf32>
    %cst_2 = arith.constant 1.000000e+00 : f32
    %20 = vector.broadcast %cst_2 : f32 to vector<1x128xf32>
    %21 = arith.addf %20, %19 : vector<1x128xf32>
    %22 = arith.divf %20, %21 : vector<1x128xf32>
    %c2 = arith.constant 2 : index
    %23 = memref.load %arg1[%c2] : memref<18xf32, #tpu.memory_space<smem>>
    %24 = vector.broadcast %23 : f32 to vector<1x128xf32>
    %25 = arith.mulf %24, %0 : vector<1x128xf32>
    %c6 = arith.constant 6 : index
    %26 = memref.load %arg1[%c6] : memref<18xf32, #tpu.memory_space<smem>>
    %27 = vector.broadcast %26 : f32 to vector<1x128xf32>
    %28 = arith.addf %25, %27 : vector<1x128xf32>
    %29 = arith.negf %28 : vector<1x128xf32>
    %30 = math.exp %29 : vector<1x128xf32>
    %cst_3 = arith.constant 1.000000e+00 : f32
    %31 = vector.broadcast %cst_3 : f32 to vector<1x128xf32>
    %32 = arith.addf %31, %30 : vector<1x128xf32>
    %33 = arith.divf %31, %32 : vector<1x128xf32>
    %c3 = arith.constant 3 : index
    %34 = memref.load %arg1[%c3] : memref<18xf32, #tpu.memory_space<smem>>
    %35 = vector.broadcast %34 : f32 to vector<1x128xf32>
    %36 = arith.mulf %35, %0 : vector<1x128xf32>
    %c7 = arith.constant 7 : index
    %37 = memref.load %arg1[%c7] : memref<18xf32, #tpu.memory_space<smem>>
    %38 = vector.broadcast %37 : f32 to vector<1x128xf32>
    %39 = arith.addf %36, %38 : vector<1x128xf32>
    %40 = arith.negf %39 : vector<1x128xf32>
    %41 = math.exp %40 : vector<1x128xf32>
    %cst_4 = arith.constant 1.000000e+00 : f32
    %42 = vector.broadcast %cst_4 : f32 to vector<1x128xf32>
    %43 = arith.addf %42, %41 : vector<1x128xf32>
    %44 = arith.divf %42, %43 : vector<1x128xf32>
    %c8 = arith.constant 8 : index
    %45 = memref.load %arg1[%c8] : memref<18xf32, #tpu.memory_space<smem>>
    %46 = vector.broadcast %45 : f32 to vector<1x128xf32>
    %47 = arith.mulf %46, %11 : vector<1x128xf32>
    %c10 = arith.constant 10 : index
    %48 = memref.load %arg1[%c10] : memref<18xf32, #tpu.memory_space<smem>>
    %49 = vector.broadcast %48 : f32 to vector<1x128xf32>
    %50 = arith.mulf %49, %22 : vector<1x128xf32>
    %51 = arith.addf %47, %50 : vector<1x128xf32>
    %c12 = arith.constant 12 : index
    %52 = memref.load %arg1[%c12] : memref<18xf32, #tpu.memory_space<smem>>
    %53 = vector.broadcast %52 : f32 to vector<1x128xf32>
    %54 = arith.mulf %53, %33 : vector<1x128xf32>
    %55 = arith.addf %51, %54 : vector<1x128xf32>
    %c14 = arith.constant 14 : index
    %56 = memref.load %arg1[%c14] : memref<18xf32, #tpu.memory_space<smem>>
    %57 = vector.broadcast %56 : f32 to vector<1x128xf32>
    %58 = arith.mulf %57, %44 : vector<1x128xf32>
    %59 = arith.addf %55, %58 : vector<1x128xf32>
    %c16 = arith.constant 16 : index
    %60 = memref.load %arg1[%c16] : memref<18xf32, #tpu.memory_space<smem>>
    %61 = vector.broadcast %60 : f32 to vector<1x128xf32>
    %62 = arith.addf %59, %61 : vector<1x128xf32>
    %c9 = arith.constant 9 : index
    %63 = memref.load %arg1[%c9] : memref<18xf32, #tpu.memory_space<smem>>
    %64 = vector.broadcast %63 : f32 to vector<1x128xf32>
    %65 = arith.mulf %64, %11 : vector<1x128xf32>
    %c11 = arith.constant 11 : index
    %66 = memref.load %arg1[%c11] : memref<18xf32, #tpu.memory_space<smem>>
    %67 = vector.broadcast %66 : f32 to vector<1x128xf32>
    %68 = arith.mulf %67, %22 : vector<1x128xf32>
    %69 = arith.addf %65, %68 : vector<1x128xf32>
    %c13 = arith.constant 13 : index
    %70 = memref.load %arg1[%c13] : memref<18xf32, #tpu.memory_space<smem>>
    %71 = vector.broadcast %70 : f32 to vector<1x128xf32>
    %72 = arith.mulf %71, %33 : vector<1x128xf32>
    %73 = arith.addf %69, %72 : vector<1x128xf32>
    %c15 = arith.constant 15 : index
    %74 = memref.load %arg1[%c15] : memref<18xf32, #tpu.memory_space<smem>>
    %75 = vector.broadcast %74 : f32 to vector<1x128xf32>
    %76 = arith.mulf %75, %44 : vector<1x128xf32>
    %77 = arith.addf %73, %76 : vector<1x128xf32>
    %c17 = arith.constant 17 : index
    %78 = memref.load %arg1[%c17] : memref<18xf32, #tpu.memory_space<smem>>
    %79 = vector.broadcast %78 : f32 to vector<1x128xf32>
    %80 = arith.addf %77, %79 : vector<1x128xf32>
    %81 = arith.subf %62, %80 : vector<1x128xf32>
    %82 = arith.negf %81 : vector<1x128xf32>
    %83 = math.exp %82 : vector<1x128xf32>
    %cst_5 = arith.constant 1.000000e+00 : f32
    %84 = vector.broadcast %cst_5 : f32 to vector<1x128xf32>
    %85 = arith.addf %84, %83 : vector<1x128xf32>
    %86 = arith.divf %84, %85 : vector<1x128xf32>
    %c0_6 = arith.constant 0 : index
    %c0_7 = arith.constant 0 : index
    %87 = vector.load %arg3[%c0_6, %c0_7] : memref<2x128xf32, #tpu.memory_space<vmem>>, vector<1x128xf32>
    tpu.vector_store %arg3[%c0_6, %c0_7], %86 {strides = array<i32>} : memref<2x128xf32, #tpu.memory_space<vmem>>, vector<1x128xf32>,
    %cst_8 = arith.constant 1.000000e+00 : f32
    %88 = vector.broadcast %cst_8 : f32 to vector<1x128xf32>
    %89 = arith.subf %88, %86 : vector<1x128xf32>
    %c1_9 = arith.constant 1 : index
    %c0_10 = arith.constant 0 : index
    %90 = vector.load %arg3[%c1_9, %c0_10] : memref<2x128xf32, #tpu.memory_space<vmem>>, vector<1x128xf32>
    tpu.vector_store %arg3[%c1_9, %c0_10], %89 {strides = array<i32>} : memref<2x128xf32, #tpu.memory_space<vmem>>, vector<1x128xf32>,
    return
  }
  func.func @transform_0(%arg0: i32) -> i32 {
    %c0_i32 = arith.constant 0 : i32
    %c0_i32_0 = arith.constant 0 : i32
    return %c0_i32 : i32
  }
  func.func @transform_1(%arg0: i32) -> (i32, i32) {
    %c0_i32 = arith.constant 0 : i32
    %c0_i32_0 = arith.constant 0 : i32
    return %c0_i32, %arg0 : i32, i32
  }
  func.func @transform_2(%arg0: i32) -> (i32, i32) {
    %c0_i32 = arith.constant 0 : i32
    %c0_i32_0 = arith.constant 0 : i32
    return %c0_i32, %arg0 : i32, i32
  }
}

</mosaic_0001>

<llo_original>
// kernel: tpu_custom_call.1
$region0: #{tpu_custom_call.1}
  #allocation0 [shape = 'u32[]', space=smem, size = 0x4, offset = 0x4, fixed_abs, tag = 'smem constant byte address 0x4 - core index']
  #allocation1 [shape = 'u32[72,128]{1,0:T(1,128)}', space=vmem, size = 0x9000, scoped, tag = 'internal scratch']
  %s0 = inlined_call_operand.hbm [shape: f32[18], index: 0, kind: input, shape index: {}]
  %s1 = inlined_call_operand.hbm [shape: f32[1,128], index: 1, kind: input, shape index: {}]
  %s2 = inlined_call_operand.hbm [shape: f32[2,128], index: 2, kind: output, shape index: {}]
  %s3 = sld [smem:[#allocation0]]
  $region26: #{tpu_custom_call.1} parent=0
    _
  %s5 = ssub.s32 1, %s3
  %s6 = scalar_select 0, %s5, %s3
  $region1: #{tpu_custom_call.1} parent=0
    #allocation2 [shape = 'u8[512]{0}', space=smem, size = 0x200, scoped, tag = 'input window, operand 0, single buffered']
    #allocation3 [shape = 's32[1]{0}', space=sflag, size = 0x4, scoped, tag = 'scoped memory for tpu_custom_call.1']
    #allocation4 [shape = 's32[1]{0}', space=sflag, size = 0x4, scoped, tag = 'scoped memory for tpu_custom_call.1']
    #allocation5 [shape = 's32[1]{0}', space=sflag, size = 0x4, scoped, tag = 'scoped memory for tpu_custom_call.1']
    #allocation6 [shape = 'u8[512]{0}', space=vmem, size = 0x400, scoped, tag = 'input window, operand 1, single buffered']
    #allocation7 [shape = 'u8[1024]{0}', space=vmem, size = 0x400, scoped, tag = 'output window, operand 0, single buffered']
    %7 = vsyncpa [#allocation5], 0
    %8 = vsyncpa [#allocation3], 0
    %9 = vsyncpa [#allocation4], 0
    // Predicated region
    $region2: #{tpu_custom_call.1} parent=1 // pred_check
      _
    $region3: #{tpu_custom_call.1} parent=1 // pred_check_branch
      %11 = sbr.rel (0) target = $region5
    $region4: #{tpu_custom_call.1} parent=1 // pred_region
      %13 = vsyncadd [#allocation5], 0
      %s15 = sshll.u32 %s0, 4
      %s16 = int_to_ptr.hbm [resolvable:$true] %s15
      %18 = dma.hbm_to_smem %s16, 16, [#allocation2], [#allocation5]
    $region5: #{tpu_custom_call.1} parent=1 // pred_fallthru
      _
    // Predicated region
    $region6: #{tpu_custom_call.1} parent=1 // pred_check
      _
    $region7: #{tpu_custom_call.1} parent=1 // pred_check_branch
      %20 = sbr.rel (0) target = $region9
    $region8: #{tpu_custom_call.1} parent=1 // pred_region
      %22 = vsyncadd [#allocation3], 0
      %s24 = sshll.u32 %s1, 4
      %s25 = int_to_ptr.hbm [resolvable:$true] %s24
      %s26 = sshll.u32 [#allocation6], 4
      %s27 = int_to_ptr.vmem [resolvable:$true] %s26
      %29 = dma.hbm_to_vmem [thread:$0]  %s25, 16, %s27, [#allocation3]
    $region9: #{tpu_custom_call.1} parent=1 // pred_fallthru
      _
    // Predicated region
    $region10: #{tpu_custom_call.1} parent=1 // pred_check
      _
    $region11: #{tpu_custom_call.1} parent=1 // pred_check_branch
      %31 = sbr.rel (0) target = $region13
    $region12: #{tpu_custom_call.1} parent=1 // pred_region
      %33 = dma.done [#allocation5], 16
    $region13: #{tpu_custom_call.1} parent=1 // pred_fallthru
      _
    // Predicated region
    $region14: #{tpu_custom_call.1} parent=1 // pred_check
      _
    $region15: #{tpu_custom_call.1} parent=1 // pred_check_branch
      %35 = sbr.rel (0) target = $region17
    $region16: #{tpu_custom_call.1} parent=1 // pred_region
      %37 = dma.done [#allocation3], 16
    $region17: #{tpu_custom_call.1} parent=1 // pred_fallthru
      _
    %38 = sfence
    %v39 = vld [vmem:[#allocation6] sm:$0x1]
    %s40 = sld [smem:[#allocation2]]
    %v41 = vstv %s40
    %v42 = vmul.f32 %v41, %v39
    %s43 = sld [smem:[#allocation2 + $0x4]]
    %v44 = vstv %s43
    %v45 = vadd.f32 %v42, %v44
    %v46 = vxor.u32 %v45, 2147483648
    %v47 = vmul.f32 %v46, 1.442695
    %v48 = vpow.pop %v47
    %v49 = vadd.f32 %v48, 1.0
    %v50 = vrcp.pop %v49
    %v51 = vmul.f32 %v49, %v50
    %v52 = vsub.f32 1.0, %v51
    %v53 = vmul.f32 %v50, %v52
    %v54 = vadd.f32 %v50, %v53
    %vm55 = vweird.f32 %v49
    %vm56 = vweird.f32 %v50
    %vm57 = vmor %vm55, %vm56
    %v58 = vsel %vm57, %v50, %v54
    %v59 = vand.u32 2147483647, %v49
    %vm60 = vcmp.eq.f32.partialorder %v59, 8.507059e+37
    %v61 = vand.u32 %v49, 2147483648
    %v62 = vor.u32 1.1754944e-38, %v61
    %v63 = vsel %vm60, %v62, %v58
    %v64 = vmul.f32 1.0, %v63
    %s65 = sld [smem:[#allocation2 + $0x1]]
    %v66 = vstv %s65
    %v67 = vmul.f32 %v66, %v39
    %s68 = sld [smem:[#allocation2 + $0x5]]
    %v69 = vstv %s68
    %v70 = vadd.f32 %v67, %v69
    %v71 = vxor.u32 %v70, 2147483648
    %v72 = vmul.f32 %v71, 1.442695
    %v73 = vpow.pop %v72
    %v74 = vadd.f32 %v73, 1.0
    %v75 = vrcp.pop %v74
    %v76 = vmul.f32 %v74, %v75
    %v77 = vsub.f32 1.0, %v76
    %v78 = vmul.f32 %v75, %v77
    %v79 = vadd.f32 %v75, %v78
    %vm80 = vweird.f32 %v74
    %vm81 = vweird.f32 %v75
    %vm82 = vmor %vm80, %vm81
    %v83 = vsel %vm82, %v75, %v79
    %v84 = vand.u32 2147483647, %v74
    %vm85 = vcmp.eq.f32.partialorder %v84, 8.507059e+37
    %v86 = vand.u32 %v74, 2147483648
    %v87 = vor.u32 1.1754944e-38, %v86
    %v88 = vsel %vm85, %v87, %v83
    %v89 = vmul.f32 1.0, %v88
    %s90 = sld [smem:[#allocation2 + $0x2]]
    %v91 = vstv %s90
    %v92 = vmul.f32 %v91, %v39
    %s93 = sld [smem:[#allocation2 + $0x6]]
    %v94 = vstv %s93
    %v95 = vadd.f32 %v92, %v94
    %v96 = vxor.u32 %v95, 2147483648
    %v97 = vmul.f32 %v96, 1.442695
    %v98 = vpow.pop %v97
    %v99 = vadd.f32 %v98, 1.0
    %v100 = vrcp.pop %v99
    %v101 = vmul.f32 %v99, %v100
    %v102 = vsub.f32 1.0, %v101
    %v103 = vmul.f32 %v100, %v102
    %v104 = vadd.f32 %v100, %v103
    %vm105 = vweird.f32 %v99
    %vm106 = vweird.f32 %v100
    %vm107 = vmor %vm105, %vm106
    %v108 = vsel %vm107, %v100, %v104
    %v109 = vand.u32 2147483647, %v99
    %vm110 = vcmp.eq.f32.partialorder %v109, 8.507059e+37
    %v111 = vand.u32 %v99, 2147483648
    %v112 = vor.u32 1.1754944e-38, %v111
    %v113 = vsel %vm110, %v112, %v108
    %v114 = vmul.f32 1.0, %v113
    %s115 = sld [smem:[#allocation2 + $0x3]]
    %v116 = vstv %s115
    %v117 = vmul.f32 %v116, %v39
    %s118 = sld [smem:[#allocation2 + $0x7]]
    %v119 = vstv %s118
    %v120 = vadd.f32 %v117, %v119
    %v121 = vxor.u32 %v120, 2147483648
    %v122 = vmul.f32 %v121, 1.442695
    %v123 = vpow.pop %v122
    %v124 = vadd.f32 %v123, 1.0
    %v125 = vrcp.pop %v124
    %v126 = vmul.f32 %v124, %v125
    %v127 = vsub.f32 1.0, %v126
    %v128 = vmul.f32 %v125, %v127
    %v129 = vadd.f32 %v125, %v128
    %vm130 = vweird.f32 %v124
    %vm131 = vweird.f32 %v125
    %vm132 = vmor %vm130, %vm131
    %v133 = vsel %vm132, %v125, %v129
    %v134 = vand.u32 2147483647, %v124
    %vm135 = vcmp.eq.f32.partialorder %v134, 8.507059e+37
    %v136 = vand.u32 %v124, 2147483648
    %v137 = vor.u32 1.1754944e-38, %v136
    %v138 = vsel %vm135, %v137, %v133
    %v139 = vmul.f32 1.0, %v138
    %s140 = sld [smem:[#allocation2 + $0x8]]
    %v141 = vstv %s140
    %v142 = vmul.f32 %v141, %v64
    %s143 = sld [smem:[#allocation2 + $0xa]]
    %v144 = vstv %s143
    %v145 = vmul.f32 %v144, %v89
    %v146 = vadd.f32 %v142, %v145
    %s147 = sld [smem:[#allocation2 + $0xc]]
    %v148 = vstv %s147
    %v149 = vmul.f32 %v148, %v114
    %v150 = vadd.f32 %v146, %v149
    %s151 = sld [smem:[#allocation2 + $0xe]]
    %v152 = vstv %s151
    %v153 = vmul.f32 %v152, %v139
    %v154 = vadd.f32 %v150, %v153
    %s155 = sld [smem:[#allocation2 + $0x10]]
    %v156 = vstv %s155
    %v157 = vadd.f32 %v154, %v156
    %s158 = sld [smem:[#allocation2 + $0x9]]
    %v159 = vstv %s158
    %v160 = vmul.f32 %v159, %v64
    %s161 = sld [smem:[#allocation2 + $0xb]]
    %v162 = vstv %s161
    %v163 = vmul.f32 %v162, %v89
    %v164 = vadd.f32 %v160, %v163
    %s165 = sld [smem:[#allocation2 + $0xd]]
    %v166 = vstv %s165
    %v167 = vmul.f32 %v166, %v114
    %v168 = vadd.f32 %v164, %v167
    %s169 = sld [smem:[#allocation2 + $0xf]]
    %v170 = vstv %s169
    %v171 = vmul.f32 %v170, %v139
    %v172 = vadd.f32 %v168, %v171
    %s173 = sld [smem:[#allocation2 + $0x11]]
    %v174 = vstv %s173
    %v175 = vadd.f32 %v172, %v174
    %v176 = vsub.f32 %v157, %v175
    %v177 = vxor.u32 %v176, 2147483648
    %v178 = vmul.f32 %v177, 1.442695
    %v179 = vpow.pop %v178
    %v180 = vadd.f32 %v179, 1.0
    %v181 = vrcp.pop %v180
    %v182 = vmul.f32 %v180, %v181
    %v183 = vsub.f32 1.0, %v182
    %v184 = vmul.f32 %v181, %v183
    %v185 = vadd.f32 %v181, %v184
    %vm186 = vweird.f32 %v180
    %vm187 = vweird.f32 %v181
    %vm188 = vmor %vm186, %vm187
    %v189 = vsel %vm188, %v181, %v185
    %v190 = vand.u32 2147483647, %v180
    %vm191 = vcmp.eq.f32.partialorder %v190, 8.507059e+37
    %v192 = vand.u32 %v180, 2147483648
    %v193 = vor.u32 1.1754944e-38, %v192
    %v194 = vsel %vm191, %v193, %v189
    %v195 = vmul.f32 1.0, %v194
    %196 = vst [vmem:[#allocation7] sm:$0x1] %v195
    %v197 = vsub.f32 1.0, %v195
    %198 = vst [vmem:[#allocation7 + $0x1] sm:$0x1] %v197
    // Predicated region
    $region18: #{tpu_custom_call.1} parent=1 // pred_check
      _
    $region19: #{tpu_custom_call.1} parent=1 // pred_check_branch
      %200 = sbr.rel (0) target = $region21
    $region20: #{tpu_custom_call.1} parent=1 // pred_region
      %202 = vsyncadd [#allocation4], 0
      %s204 = sshll.u32 [#allocation7], 4
      %s205 = int_to_ptr.vmem [resolvable:$true] %s204
      %s206 = sshll.u32 %s2, 4
      %s207 = int_to_ptr.hbm [resolvable:$true] %s206
      %209 = dma.vmem_to_hbm [thread:$0]  %s205, 32, %s207, [#allocation4]
    $region21: #{tpu_custom_call.1} parent=1 // pred_fallthru
      _
    // Predicated region
    $region22: #{tpu_custom_call.1} parent=1 // pred_check
      _
    $region23: #{tpu_custom_call.1} parent=1 // pred_check_branch
      %211 = sbr.rel (0) target = $region25
    $region24: #{tpu_custom_call.1} parent=1 // pred_region
      %213 = dma.done [#allocation4], 32
    $region25: #{tpu_custom_call.1} parent=1 // pred_fallthru
      _
    %214 = vsyncpa [#allocation3], 1
    %215 = vsyncpa [#allocation4], 1
    %216 = vsyncpa [#allocation5], 1

</llo_original>
